<compile_context>
chip_gen: v6e
topology: v6e:2x2x1
jax: 0.10.0
libtpu: 0.0.40
codegen_flags: <defaults>
</compile_context>

<pallas_src>
import jax
import jax.numpy as jnp
from jax.experimental import pallas as pl
from jax.experimental.pallas import tpu as pltpu


def se_kernel(x_ref, w1_ref, w2_ref, o_ref):
    """TB images per grid step.

    x_ref  : (TB, C, HW)  activations, native dtype (C on sublanes, HW on lanes)
    w1_ref : (C, hidden)  fc1 weight transposed (PyTorch fc1.weight.T), f32
    w2_ref : (C, hidden)  fc2 weight, PyTorch layout, f32
    o_ref  : (TB, C, HW)  output, same dtype as x
    """
    inv_hw = 1.0 / x_ref.shape[-1]

    # Pass 1: global average pool (lane-axis reduction), f32 accumulation.
    pooled = jnp.sum(x_ref[...].astype(jnp.float32), axis=-1) * inv_hw      # (TB, C)

    w1 = w1_ref[...]                                                        # (C, hidden)
    w2 = w2_ref[...]                                                        # (C, hidden)

    # fc1 + ReLU:  h[b, j] = relu( sum_c pooled[b, c] * w1[c, j] )
    h = jnp.maximum(jnp.sum(pooled[:, :, None] * w1[None], axis=1), 0.0)    # (TB, hidden)

    # fc2 + sigmoid:  gate[b, c] = sigmoid( sum_j h[b, j] * w2[c, j] )
    logits = jnp.sum(h[:, None, :] * w2[None], axis=-1)                     # (TB, C)
    gate = jax.nn.sigmoid(logits)                                           # EUP exp

    # Pass 2: re-read x from VMEM, rescale, lane-dense store in native dtype.
    o_ref[...] = (x_ref[...].astype(jnp.float32) * gate[:, :, None]).astype(o_ref.dtype)


def _choose_tb(B, C, HW, itemsize, target_block_bytes=2 << 20, max_tb=32):
    """Largest divisor of B that keeps the x block near the byte budget and the
    grid length >= 2 (so both v7x TensorCores get work)."""
    per_image = max(C * HW * itemsize, 1)
    tb_cap = max(1, min(max_tb, target_block_bytes // per_image))
    if B >= 2:
        tb_cap = min(tb_cap, B // 2)
    tb_cap = max(tb_cap, 1)
    tb = 1
    for d in range(1, tb_cap + 1):
        if B % d == 0:
            tb = d
    return tb


def se_attention_forward(x_nchw, w_fc1_t, w_fc2, *, target_block_bytes=2 << 20):
    """x_nchw: (B, C, H, W) f32 or bf16. Returns (B, C, H, W) in the same dtype."""
    B, C, H, W = x_nchw.shape
    HW = H * W
    hidden = w_fc1_t.shape[1]

    # Contiguous reshape only (free); no transposes, no wrapper-side dtype casts
    # on the big tensor. HW multiple of 128 / C multiple of 8 is the fast
    # (unmasked) path; other shapes still work via full-extent blocks.
    x = x_nchw.reshape(B, C, HW)
    itemsize = jnp.dtype(x.dtype).itemsize

    TB = _choose_tb(B, C, HW, itemsize, target_block_bytes)
    grid = (B // TB,)

    # VMEM budget: double-buffered in + out blocks, plus the tiny weights.
    block_bytes = TB * C * HW * itemsize
    w_bytes = 2 * C * hidden * 4
    vmem_limit = int(min(48 << 20, max(32 << 20, 4 * block_bytes + 2 * w_bytes + (4 << 20))))

    # Gate math stays in f32 (weights are tiny; cast is free).
    w1 = w_fc1_t.astype(jnp.float32)
    w2 = w_fc2.astype(jnp.float32)

    out = pl.pallas_call(
        se_kernel,
        out_shape=jax.ShapeDtypeStruct((B, C, HW), x.dtype),
        grid=grid,
        in_specs=[
            pl.BlockSpec((TB, C, HW), lambda b: (b, 0, 0)),
            pl.BlockSpec((C, hidden), lambda b: (0, 0)),
            pl.BlockSpec((C, hidden), lambda b: (0, 0)),
        ],
        out_specs=pl.BlockSpec((TB, C, HW), lambda b: (b, 0, 0)),
        compiler_params=pltpu.CompilerParams(
            dimension_semantics=("parallel",),
            vmem_limit_bytes=vmem_limit,
        ),
    )(x, w1, w2)

    return out.reshape(B, C, H, W)


def se_attention_reference(x, w_fc1_t, w_fc2):
    """Pure-JAX reference mirroring the PyTorch SEAttention forward."""
    pooled = jnp.mean(x, axis=(2, 3))                # (B, C)
    h = jnp.maximum(pooled @ w_fc1_t, 0.0)           # (B, hidden)
    gate = jax.nn.sigmoid(h @ w_fc2.T)               # (B, C)
    return x * gate[:, :, None, None]


if __name__ == "__main__":
    # Small shapes consistent with the module (reduction=16 as in the default).
    B, C, H, W = 4, 64, 16, 16
    REDUCTION = 16
    hidden = C // REDUCTION  # = 4

    root = jax.random.PRNGKey(0)
    kx, k1, k2 = jax.random.split(root, 3)
    x = jax.random.normal(kx, (B, C, H, W), jnp.float32)
    # PyTorch fc1.weight is (hidden, C); we keep its transpose (C, hidden).
    w_fc1_t = jax.random.normal(k1, (C, hidden), jnp.float32) / jnp.sqrt(float(C))
    # PyTorch fc2.weight is (C, hidden); used as-is.
    w_fc2 = jax.random.normal(k2, (C, hidden), jnp.float32) / jnp.sqrt(float(hidden))

    # f32 path (PyTorch-native dtype): tight check.
    out = jax.block_until_ready(se_attention_forward(x, w_fc1_t, w_fc2))
    ref = jax.block_until_ready(se_attention_reference(x, w_fc1_t, w_fc2))
    assert out.shape == (B, C, H, W), out.shape
    err = float(jnp.max(jnp.abs(out - ref)))
    assert err < 1e-4, f"f32 max abs error {err}"

    # bf16 I/O path (halves HBM traffic for the memory-bound rescale): loose check.
    x_bf = x.astype(jnp.bfloat16)
    out_bf = jax.block_until_ready(se_attention_forward(x_bf, w_fc1_t, w_fc2))
    assert out_bf.dtype == jnp.bfloat16, out_bf.dtype
    ref_bf = se_attention_reference(x_bf.astype(jnp.float32), w_fc1_t, w_fc2)
    err_bf = float(jnp.max(jnp.abs(out_bf.astype(jnp.float32) - ref_bf)))
    assert err_bf < 0.1, f"bf16 max abs error {err_bf}"

    print("KERNEL_OK")
</pallas_src>

<mosaic_0001>
module attributes {stable_mosaic.version = 11 : i64} {
  func.func @se_kernel(%arg0: i32, %arg1: memref<2x64x256xf32, #tpu.memory_space<vmem>>, %arg2: memref<64x4xf32, #tpu.memory_space<vmem>>, %arg3: memref<64x4xf32, #tpu.memory_space<vmem>>, %arg4: memref<2x64x256xf32, #tpu.memory_space<vmem>>) attributes {dimension_semantics = [#tpu.dimension_semantics<parallel>], iteration_bounds = array<i64: 2>, scalar_prefetch = 0 : i64, scratch_operands = 0 : i64, tpu.core_type = #tpu.core_type<tc>, window_params = [{transform_indices = @transform_0, window_bounds = array<i64: 2, 64, 256>}, {pipeline_mode = #tpu.pipeline_mode<synchronous>, transform_indices = @transform_1, window_bounds = array<i64: 64, 4>}, {pipeline_mode = #tpu.pipeline_mode<synchronous>, transform_indices = @transform_2, window_bounds = array<i64: 64, 4>}, {transform_indices = @transform_3, window_bounds = array<i64: 2, 64, 256>}]} {
    %c0 = arith.constant 0 : index
    %c0_0 = arith.constant 0 : index
    %c0_1 = arith.constant 0 : index
    %0 = vector.load %arg1[%c0, %c0_0, %c0_1] : memref<2x64x256xf32, #tpu.memory_space<vmem>>, vector<2x64x256xf32>
    %cst = arith.constant dense<0.000000e+00> : vector<2x64xf32>
    %1 = vector.multi_reduction <add>, %0, %cst [2] : vector<2x64x256xf32> to vector<2x64xf32>
    %cst_2 = arith.constant 3.906250e-03 : f32
    %2 = vector.broadcast %cst_2 : f32 to vector<2x64xf32>
    %3 = arith.mulf %1, %2 : vector<2x64xf32>
    %c0_3 = arith.constant 0 : index
    %c0_4 = arith.constant 0 : index
    %4 = vector.load %arg2[%c0_3, %c0_4] : memref<64x4xf32, #tpu.memory_space<vmem>>, vector<64x4xf32>
    %c0_5 = arith.constant 0 : index
    %c0_6 = arith.constant 0 : index
    %5 = vector.load %arg3[%c0_5, %c0_6] : memref<64x4xf32, #tpu.memory_space<vmem>>, vector<64x4xf32>
    %6 = vector.shape_cast %3 : vector<2x64xf32> to vector<2x64x1xf32>
    %7 = vector.shape_cast %4 : vector<64x4xf32> to vector<1x64x4xf32>
    %8 = vector.broadcast %6 : vector<2x64x1xf32> to vector<2x64x4xf32>
    %9 = vector.broadcast %7 : vector<1x64x4xf32> to vector<2x64x4xf32>
    %10 = arith.mulf %8, %9 : vector<2x64x4xf32>
    %cst_7 = arith.constant dense<0.000000e+00> : vector<2x4xf32>
    %11 = vector.multi_reduction <add>, %10, %cst_7 [1] : vector<2x64x4xf32> to vector<2x4xf32>
    %cst_8 = arith.constant 0.000000e+00 : f32
    %12 = vector.broadcast %cst_8 : f32 to vector<2x4xf32>
    %13 = arith.maximumf %11, %12 : vector<2x4xf32>
    %14 = vector.shape_cast %13 : vector<2x4xf32> to vector<2x1x4xf32>
    %15 = vector.shape_cast %5 : vector<64x4xf32> to vector<1x64x4xf32>
    %16 = vector.broadcast %14 : vector<2x1x4xf32> to vector<2x64x4xf32>
    %17 = vector.broadcast %15 : vector<1x64x4xf32> to vector<2x64x4xf32>
    %18 = arith.mulf %16, %17 : vector<2x64x4xf32>
    %cst_9 = arith.constant dense<0.000000e+00> : vector<2x64xf32>
    %19 = vector.multi_reduction <add>, %18, %cst_9 [2] : vector<2x64x4xf32> to vector<2x64xf32>
    %20 = arith.negf %19 : vector<2x64xf32>
    %21 = math.exp %20 : vector<2x64xf32>
    %cst_10 = arith.constant 1.000000e+00 : f32
    %22 = vector.broadcast %cst_10 : f32 to vector<2x64xf32>
    %23 = arith.addf %22, %21 : vector<2x64xf32>
    %24 = arith.divf %22, %23 : vector<2x64xf32>
    %c0_11 = arith.constant 0 : index
    %c0_12 = arith.constant 0 : index
    %c0_13 = arith.constant 0 : index
    %25 = vector.load %arg1[%c0_11, %c0_12, %c0_13] : memref<2x64x256xf32, #tpu.memory_space<vmem>>, vector<2x64x256xf32>
    %26 = vector.shape_cast %24 : vector<2x64xf32> to vector<2x64x1xf32>
    %27 = vector.broadcast %26 : vector<2x64x1xf32> to vector<2x64x256xf32>
    %28 = arith.mulf %25, %27 : vector<2x64x256xf32>
    %c0_14 = arith.constant 0 : index
    %c0_15 = arith.constant 0 : index
    %c0_16 = arith.constant 0 : index
    %29 = vector.load %arg4[%c0_14, %c0_15, %c0_16] : memref<2x64x256xf32, #tpu.memory_space<vmem>>, vector<2x64x256xf32>
    tpu.vector_store %arg4[%c0_14, %c0_15, %c0_16], %28 {strides = array<i32>} : memref<2x64x256xf32, #tpu.memory_space<vmem>>, vector<2x64x256xf32>,
    return
  }
  func.func @transform_0(%arg0: i32) -> (i32, i32, i32) {
    %c0_i32 = arith.constant 0 : i32
    %c0_i32_0 = arith.constant 0 : i32
    %c0_i32_1 = arith.constant 0 : i32
    return %arg0, %c0_i32, %c0_i32_0 : i32, i32, i32
  }
  func.func @transform_1(%arg0: i32) -> (i32, i32) {
    %c0_i32 = arith.constant 0 : i32
    %c0_i32_0 = arith.constant 0 : i32
    %c0_i32_1 = arith.constant 0 : i32
    return %c0_i32, %c0_i32_0 : i32, i32
  }
  func.func @transform_2(%arg0: i32) -> (i32, i32) {
    %c0_i32 = arith.constant 0 : i32
    %c0_i32_0 = arith.constant 0 : i32
    %c0_i32_1 = arith.constant 0 : i32
    return %c0_i32, %c0_i32_0 : i32, i32
  }
  func.func @transform_3(%arg0: i32) -> (i32, i32, i32) {
    %c0_i32 = arith.constant 0 : i32
    %c0_i32_0 = arith.constant 0 : i32
    %c0_i32_1 = arith.constant 0 : i32
    return %arg0, %c0_i32, %c0_i32_0 : i32, i32, i32
  }
}

</mosaic_0001>

<llo_original>
// kernel: tpu_custom_call.1
$region0: #{tpu_custom_call.1}
  #allocation0 [shape = 'u32[]', space=smem, size = 0x4, offset = 0x4, fixed_abs, tag = 'smem constant byte address 0x4 - core index']
  #allocation1 [shape = 'u32[144,128]{1,0:T(1,128)}', space=vmem, size = 0x12000, scoped, tag = 'internal scratch']
  %s0 = inlined_call_operand.hbm [shape: f32[4,64,256], index: 0, kind: input, shape index: {}]
  %s1 = inlined_call_operand.vmem [shape: f32[64,4], index: 1, kind: input, shape index: {}]
  %s2 = inlined_call_operand.vmem [shape: f32[64,4], index: 2, kind: input, shape index: {}]
  %s3 = inlined_call_operand.hbm [shape: f32[4,64,256], index: 3, kind: output, shape index: {}]
  %s4 = sld [smem:[#allocation0]]
  $region49: #{tpu_custom_call.1} parent=0
    _
  %s6 = ssub.s32 1, %s4
  %s7 = scalar_select 0, %s6, %s4
  $region1: #{tpu_custom_call.1} parent=0
    #allocation2 [shape = 'u8[262144]{0}', space=vmem, size = 0x40000, scoped, tag = 'input window, operand 0']
    #allocation3 [shape = 's32[2]{0}', space=sflag, size = 0x8, scoped, tag = 'scoped memory for tpu_custom_call.1']
    #allocation4 [shape = 's32[2]{0}', space=sflag, size = 0x8, scoped, tag = 'scoped memory for tpu_custom_call.1']
    #allocation5 [shape = 'u8[262144]{0}', space=vmem, size = 0x40000, scoped, tag = 'output window, operand 0']
    %8 = vsyncpa [#allocation3], 0
    %s9 = scalar_lea.sflag [#allocation3], 1
    %10 = vsyncpa %s9, 0
    %11 = vsyncpa [#allocation4], 0
    %s12 = scalar_lea.sflag [#allocation4], 1
    %13 = vsyncpa %s12, 0
    loop: start=0, step=1, limit=4
    $region2: #{tpu_custom_call.1} parent=1 // loop_pre_header
      _
    $region3: #{tpu_custom_call.1} parent=1 // loop_header
      %s15 = sphi 0, %s19
      %p16 = scmp.ge.s32.totalorder %s15, 4
      %s25 = sphi 0, %s27
      %s28 = sphi 0, %s25
      %s29 = sphi 0, %s28
      %s45 = sphi 0, %s29
      %s49 = sphi 0, %s49
      %s51 = sphi 0, %s49
      %s52 = sphi 0, %s51
      %s66 = sphi 0, %s52
      %s70 = sphi 0, %s70
      %s72 = sphi 0, %s70
      %s73 = sphi 0, %s72
      %s87 = sphi 0, %s73
      %s93 = sphi 0, %s95
      %s96 = sphi 0, %s93
      %s97 = sphi 0, %s96
      %s113 = sphi 0, %s97
    $region4: #{tpu_custom_call.1} parent=1 // loop_header_branch
      %18 = sbr.rel (%p16) target = $region8
    $region5: #{tpu_custom_call.1} parent=1 // loop_body
      %s20 = ssub.s32 %s15, 1
      %s21 = ssub.s32 %s15, 2
      %s22 = sadd.s32 %s15, 1
      %s23 = ssub.s32 %s15, %s22
      %p24 = scmp.eq.s32.totalorder %s23, 0
      %s26 = sadd.s32 %s25, 1
      %s27 = scalar_select %p24, %s25, %s26
      %p30 = pneg %p24
      %p31 = scmp.eq.s32.totalorder %s15, 1
      %p32 = por %p30, %p31
      %p33 = scmp.ne.s32.totalorder %s25, %s28
      %p34 = scmp.eq.s32.totalorder %s15, 0
      %p35 = por %p33, %p34
      %p36 = scmp.ne.s32.totalorder %s25, %s28
      %p37 = scmp.eq.s32.totalorder %s20, 1
      %p38 = por %p36, %p37
      %p39 = scmp.ne.s32.totalorder %s28, %s29
      %p40 = scmp.eq.s32.totalorder %s20, 0
      %p41 = por %p39, %p40
      %p42 = scmp.ne.s32.totalorder %s28, %s29
      %p43 = scmp.eq.s32.totalorder %s21, 1
      %p44 = por %p42, %p43
      %p46 = scmp.ne.s32.totalorder %s29, %s45
      %p47 = scmp.eq.s32.totalorder %s21, 0
      %p48 = por %p46, %p47
      %s50 = sadd.s32 %s49, 1
      %p53 = scmp.eq.s32.totalorder %s15, 1
      %p54 = scmp.ne.s32.totalorder %s49, %s51
      %p55 = scmp.eq.s32.totalorder %s15, 0
      %p56 = por %p54, %p55
      %p57 = scmp.ne.s32.totalorder %s49, %s51
      %p58 = scmp.eq.s32.totalorder %s20, 1
      %p59 = por %p57, %p58
      %p60 = scmp.ne.s32.totalorder %s51, %s52
      %p61 = scmp.eq.s32.totalorder %s20, 0
      %p62 = por %p60, %p61
      %p63 = scmp.ne.s32.totalorder %s51, %s52
      %p64 = scmp.eq.s32.totalorder %s21, 1
      %p65 = por %p63, %p64
      %p67 = scmp.ne.s32.totalorder %s52, %s66
      %p68 = scmp.eq.s32.totalorder %s21, 0
      %p69 = por %p67, %p68
      %s71 = sadd.s32 %s70, 1
      %p74 = scmp.eq.s32.totalorder %s15, 1
      %p75 = scmp.ne.s32.totalorder %s70, %s72
      %p76 = scmp.eq.s32.totalorder %s15, 0
      %p77 = por %p75, %p76
      %p78 = scmp.ne.s32.totalorder %s70, %s72
      %p79 = scmp.eq.s32.totalorder %s20, 1
      %p80 = por %p78, %p79
      %p81 = scmp.ne.s32.totalorder %s72, %s73
      %p82 = scmp.eq.s32.totalorder %s20, 0
      %p83 = por %p81, %p82
      %p84 = scmp.ne.s32.totalorder %s72, %s73
      %p85 = scmp.eq.s32.totalorder %s21, 1
      %p86 = por %p84, %p85
      %p88 = scmp.ne.s32.totalorder %s73, %s87
      %p89 = scmp.eq.s32.totalorder %s21, 0
      %p90 = por %p88, %p89
      %s91 = ssub.s32 %s15, %s22
      %p92 = scmp.eq.s32.totalorder %s91, 0
      %s94 = sadd.s32 %s93, 1
      %s95 = scalar_select %p92, %s93, %s94
      %p98 = pneg %p92
      %p99 = scmp.eq.s32.totalorder %s15, 1
      %p100 = por %p98, %p99
      %p101 = scmp.ne.s32.totalorder %s93, %s96
      %p102 = scmp.eq.s32.totalorder %s15, 0
      %p103 = por %p101, %p102
      %p104 = scmp.ne.s32.totalorder %s93, %s96
      %p105 = scmp.eq.s32.totalorder %s20, 1
      %p106 = por %p104, %p105
      %p107 = scmp.ne.s32.totalorder %s96, %s97
      %p108 = scmp.eq.s32.totalorder %s20, 0
      %p109 = por %p107, %p108
      %p110 = scmp.ne.s32.totalorder %s96, %s97
      %p111 = scmp.eq.s32.totalorder %s21, 1
      %p112 = por %p110, %p111
      %p114 = scmp.ne.s32.totalorder %s97, %s113
      %p115 = scmp.eq.s32.totalorder %s21, 0
      %p116 = por %p114, %p115
      %p117 = scmp.le.s32.totalorder 1, %s15
      %p118 = scmp.lt.s32.totalorder %s15, 3
      %p119 = pnand %p117, %p118
      %p120 = pneg %p119
      // Predicated region
      $region9: #{tpu_custom_call.1} parent=5 // pred_check
        _
      $region10: #{tpu_custom_call.1} parent=5 // pred_check_branch
        %122 = sbr.rel (%p119) target = $region12
      $region11: #{tpu_custom_call.1} parent=5 // pred_region
        %s123 = ssub.s32 %s15, 1
        // Predicated region
        $region13: #{tpu_custom_call.1} parent=11 // pred_check
          %p124 = pneg %p62
        $region14: #{tpu_custom_call.1} parent=11 // pred_check_branch
          %126 = sbr.rel (%p124) target = $region16
        $region15: #{tpu_custom_call.1} parent=11 // pred_region
          _
        $region16: #{tpu_custom_call.1} parent=11 // pred_fallthru
          _
        // Predicated region
        $region17: #{tpu_custom_call.1} parent=11 // pred_check
          %p127 = pneg %p83
        $region18: #{tpu_custom_call.1} parent=11 // pred_check_branch
          %129 = sbr.rel (%p127) target = $region20
        $region19: #{tpu_custom_call.1} parent=11 // pred_region
          _
        $region20: #{tpu_custom_call.1} parent=11 // pred_fallthru
          _
      $region12: #{tpu_custom_call.1} parent=5 // pred_fallthru
        _
      %p130 = scmp.lt.s32.totalorder %s15, 2
      // Predicated region
      $region21: #{tpu_custom_call.1} parent=5 // pred_check
        %p131 = pneg %p130
      $region22: #{tpu_custom_call.1} parent=5 // pred_check_branch
        %133 = sbr.rel (%p131) target = $region24
      $region23: #{tpu_custom_call.1} parent=5 // pred_region
        // Predicated region
        $region25: #{tpu_custom_call.1} parent=23 // pred_check
          %p134 = pneg %p35
        $region26: #{tpu_custom_call.1} parent=23 // pred_check_branch
          %136 = sbr.rel (%p134) target = $region28
        $region27: #{tpu_custom_call.1} parent=23 // pred_region
          %s137 = sand.u32 %s25, 1
          %s138 = scalar_lea.sflag [#allocation3], %s137
          %s139 = sand.u32 %s25, 1
          %s140 = smul.addr %s139, 256
          %s141 = scalar_lea.vmem [#allocation2], %s140
          %s142 = smul.u32 2, %s15
          %s144 = ssub.s32 4096, 4096
          %145 = vsyncadd %s138, %s144
          %s146 = smul.addr %s142, 16
          %s147 = smul.addr %s146, 128
          %s148 = scalar_lea.hbm %s0, %s147
          %s149 = sshll.u32 %s141, 4
          %s150 = int_to_ptr.vmem [resolvable:$true] %s149
          %155 = dma.hbm_to_vmem [thread:$0]  %s148, 4096, %s150, %s138, 256, 256, 16
        $region28: #{tpu_custom_call.1} parent=23 // pred_fallthru
          _
      $region24: #{tpu_custom_call.1} parent=5 // pred_fallthru
        _
      %p156 = scmp.le.s32.totalorder 1, %s15
      %p157 = scmp.lt.s32.totalorder %s15, 3
      %p158 = pnand %p156, %p157
      %p159 = pneg %p158
      // Predicated region
      $region29: #{tpu_custom_call.1} parent=5 // pred_check
        _
      $region30: #{tpu_custom_call.1} parent=5 // pred_check_branch
        %161 = sbr.rel (%p158) target = $region32
      $region31: #{tpu_custom_call.1} parent=5 // pred_region
        %s162 = ssub.s32 %s15, 1
        %s163 = sand.u32 %s28, 1
        %s164 = scalar_lea.sflag [#allocation3], %s163
        %s165 = sand.u32 %s28, 1
        %s166 = smul.addr %s165, 256
        %s167 = scalar_lea.vmem [#allocation2], %s166
        // Predicated region
        $region33: #{tpu_custom_call.1} parent=31 // pred_check
          %p168 = pneg %p41
        $region34: #{tpu_custom_call.1} parent=31 // pred_check_branch
          %170 = sbr.rel (%p168) target = $region36
        $region35: #{tpu_custom_call.1} parent=31 // pred_region
          %171 = dma.done %s164, 4096
        $region36: #{tpu_custom_call.1} parent=31 // pred_fallthru
          _
        %s172 = sand.u32 %s28, 1
        %s173 = scalar_lea.sflag [#allocation3], %s172
        %s174 = sand.u32 %s28, 1
        %s175 = smul.addr %s174, 256
        %s176 = scalar_lea.vmem [#allocation2], %s175
        %p177 = pneg %p41
        %p178 = pneg %p38
        %p179 = pneg %p62
        %p180 = pneg %p59
        %p181 = pneg %p83
        %p182 = pneg %p80
        %p183 = pneg %p109
        %p184 = pneg %p106
        %s185 = sand.u32 %s96, 1
        %s186 = scalar_lea.sflag [#allocation4], %s185
        %s187 = sand.u32 %s96, 1
        %s188 = smul.addr %s187, 256
        %s189 = scalar_lea.vmem [#allocation5], %s188
        %s190 = smul.u32 2, %s20
        %s191 = smul.u32 2, %s20
        %v192 = vld [vmem:[%s167] sm:$0xff]
        %v193 = vld [vmem:[%s167 + $0x8] sm:$0xff]
        %v194 = vld [vmem:[%s167 + $0x10] sm:$0xff]
        %v195 = vld [vmem:[%s167 + $0x18] sm:$0xff]
        %v196 = vld [vmem:[%s167 + $0x20] sm:$0xff]
        %v197 = vld [vmem:[%s167 + $0x28] sm:$0xff]
        %v198 = vld [vmem:[%s167 + $0x30] sm:$0xff]
        %v199 = vld [vmem:[%s167 + $0x38] sm:$0xff]
        %v200 = vld [vmem:[%s167 + $0x40] sm:$0xff]
        %v201 = vld [vmem:[%s167 + $0x48] sm:$0xff]
        %v202 = vld [vmem:[%s167 + $0x50] sm:$0xff]
        %v203 = vld [vmem:[%s167 + $0x58] sm:$0xff]
        %v204 = vld [vmem:[%s167 + $0x60] sm:$0xff]
        %v205 = vld [vmem:[%s167 + $0x68] sm:$0xff]
        %v206 = vld [vmem:[%s167 + $0x70] sm:$0xff]
        %v207 = vld [vmem:[%s167 + $0x78] sm:$0xff]
        %v208 = vld [vmem:[%s167 + $0x80] sm:$0xff]
        %v209 = vld [vmem:[%s167 + $0x88] sm:$0xff]
        %v210 = vld [vmem:[%s167 + $0x90] sm:$0xff]
        %v211 = vld [vmem:[%s167 + $0x98] sm:$0xff]
        %v212 = vld [vmem:[%s167 + $0xa0] sm:$0xff]
        %v213 = vld [vmem:[%s167 + $0xa8] sm:$0xff]
        %v214 = vld [vmem:[%s167 + $0xb0] sm:$0xff]
        %v215 = vld [vmem:[%s167 + $0xb8] sm:$0xff]
        %v216 = vld [vmem:[%s167 + $0xc0] sm:$0xff]
        %v217 = vld [vmem:[%s167 + $0xc8] sm:$0xff]
        %v218 = vld [vmem:[%s167 + $0xd0] sm:$0xff]
        %v219 = vld [vmem:[%s167 + $0xd8] sm:$0xff]
        %v220 = vld [vmem:[%s167 + $0xe0] sm:$0xff]
        %v221 = vld [vmem:[%s167 + $0xe8] sm:$0xff]
        %v222 = vld [vmem:[%s167 + $0xf0] sm:$0xff]
        %v223 = vld [vmem:[%s167 + $0xf8] sm:$0xff]
        %v224 = vadd.f32 %v192, %v193
        %225 = vadd.xlane.f32.xlu0 %v224
        %v226 = vpop.xlane.xlu0 %225
        %v227 = vadd.f32 %v194, %v195
        %228 = vadd.xlane.f32.xlu0 %v227
        %v229 = vpop.xlane.xlu0 %228
        %v230 = vadd.f32 %v196, %v197
        %231 = vadd.xlane.f32.xlu0 %v230
        %v232 = vpop.xlane.xlu0 %231
        %v233 = vadd.f32 %v198, %v199
        %234 = vadd.xlane.f32.xlu0 %v233
        %v235 = vpop.xlane.xlu0 %234
        %v236 = vadd.f32 %v200, %v201
        %237 = vadd.xlane.f32.xlu0 %v236
        %v238 = vpop.xlane.xlu0 %237
        %v239 = vadd.f32 %v202, %v203
        %240 = vadd.xlane.f32.xlu0 %v239
        %v241 = vpop.xlane.xlu0 %240
        %v242 = vadd.f32 %v204, %v205
        %243 = vadd.xlane.f32.xlu0 %v242
        %v244 = vpop.xlane.xlu0 %243
        %v245 = vadd.f32 %v206, %v207
        %246 = vadd.xlane.f32.xlu0 %v245
        %v247 = vpop.xlane.xlu0 %246
        %v248 = vadd.f32 %v208, %v209
        %249 = vadd.xlane.f32.xlu0 %v248
        %v250 = vpop.xlane.xlu0 %249
        %v251 = vadd.f32 %v210, %v211
        %252 = vadd.xlane.f32.xlu0 %v251
        %v253 = vpop.xlane.xlu0 %252
        %v254 = vadd.f32 %v212, %v213
        %255 = vadd.xlane.f32.xlu0 %v254
        %v256 = vpop.xlane.xlu0 %255
        %v257 = vadd.f32 %v214, %v215
        %258 = vadd.xlane.f32.xlu0 %v257
        %v259 = vpop.xlane.xlu0 %258
        %v260 = vadd.f32 %v216, %v217
        %261 = vadd.xlane.f32.xlu0 %v260
        %v262 = vpop.xlane.xlu0 %261
        %v263 = vadd.f32 %v218, %v219
        %264 = vadd.xlane.f32.xlu0 %v263
        %v265 = vpop.xlane.xlu0 %264
        %v266 = vadd.f32 %v220, %v221
        %267 = vadd.xlane.f32.xlu0 %v266
        %v268 = vpop.xlane.xlu0 %267
        %v269 = vadd.f32 %v222, %v223
        %270 = vadd.xlane.f32.xlu0 %v269
        %v271 = vpop.xlane.xlu0 %270
        %v272 = vmul.f32 %v226, 0.00390625
        %v273 = vmul.f32 %v229, 0.00390625
        %v274 = vmul.f32 %v232, 0.00390625
        %v275 = vmul.f32 %v235, 0.00390625
        %v276 = vmul.f32 %v238, 0.00390625
        %v277 = vmul.f32 %v241, 0.00390625
        %v278 = vmul.f32 %v244, 0.00390625
        %v279 = vmul.f32 %v247, 0.00390625
        %v280 = vmul.f32 %v250, 0.00390625
        %v281 = vmul.f32 %v253, 0.00390625
        %v282 = vmul.f32 %v256, 0.00390625
        %v283 = vmul.f32 %v259, 0.00390625
        %v284 = vmul.f32 %v262, 0.00390625
        %v285 = vmul.f32 %v265, 0.00390625
        %v286 = vmul.f32 %v268, 0.00390625
        %v287 = vmul.f32 %v271, 0.00390625
        %v288 = vld [vmem:[%s1] sm:$0xff]
        %v289 = vld [vmem:[%s1 + $0x8] sm:$0xff]
        %v290 = vld [vmem:[%s1 + $0x10] sm:$0xff]
        %v291 = vld [vmem:[%s1 + $0x18] sm:$0xff]
        %v292 = vld [vmem:[%s1 + $0x20] sm:$0xff]
        %v293 = vld [vmem:[%s1 + $0x28] sm:$0xff]
        %v294 = vld [vmem:[%s1 + $0x30] sm:$0xff]
        %v295 = vld [vmem:[%s1 + $0x38] sm:$0xff]
        %v296 = vld [vmem:[%s2] sm:$0xff]
        %v297 = vld [vmem:[%s2 + $0x8] sm:$0xff]
        %v298 = vld [vmem:[%s2 + $0x10] sm:$0xff]
        %v299 = vld [vmem:[%s2 + $0x18] sm:$0xff]
        %v300 = vld [vmem:[%s2 + $0x20] sm:$0xff]
        %v301 = vld [vmem:[%s2 + $0x28] sm:$0xff]
        %v302 = vld [vmem:[%s2 + $0x30] sm:$0xff]
        %v303 = vld [vmem:[%s2 + $0x38] sm:$0xff]
        %v304 = vmul.f32 %v272, %v288
        %v305 = vmul.f32 %v273, %v289
        %v306 = vmul.f32 %v274, %v290
        %v307 = vmul.f32 %v275, %v291
        %v308 = vmul.f32 %v276, %v292
        %v309 = vmul.f32 %v277, %v293
        %v310 = vmul.f32 %v278, %v294
        %v311 = vmul.f32 %v279, %v295
        %v312 = vmul.f32 %v280, %v288
        %v313 = vmul.f32 %v281, %v289
        %v314 = vmul.f32 %v282, %v290
        %v315 = vmul.f32 %v283, %v291
        %v316 = vmul.f32 %v284, %v292
        %v317 = vmul.f32 %v285, %v293
        %v318 = vmul.f32 %v286, %v294
        %v319 = vmul.f32 %v287, %v295
        %vm320 = vcmask 31744
        %v321 = vsel %vm320, %v304, 0.0
        %v322 = vsel %vm320, %v305, 0.0
        %v323 = vadd.f32 %v321, %v322
        %v324 = vsel %vm320, %v306, 0.0
        %v325 = vadd.f32 %v323, %v324
        %v326 = vsel %vm320, %v307, 0.0
        %v327 = vadd.f32 %v325, %v326
        %v328 = vsel %vm320, %v308, 0.0
        %v329 = vadd.f32 %v327, %v328
        %v330 = vsel %vm320, %v309, 0.0
        %v331 = vadd.f32 %v329, %v330
        %v332 = vsel %vm320, %v310, 0.0
        %v333 = vadd.f32 %v331, %v332
        %v334 = vsel %vm320, %v311, 0.0
        %v335 = vadd.f32 %v333, %v334
        %v336 = vrot.slane %v335, 4
        %v337 = vadd.f32 %v335, %v336
        %v338 = vrot.slane %v337, 2
        %v339 = vadd.f32 %v337, %v338
        %v340 = vrot.slane %v339, 1
        %v341 = vadd.f32 %v339, %v340
        %v342 = vsel %vm320, %v312, 0.0
        %v343 = vsel %vm320, %v313, 0.0
        %v344 = vadd.f32 %v342, %v343
        %v345 = vsel %vm320, %v314, 0.0
        %v346 = vadd.f32 %v344, %v345
        %v347 = vsel %vm320, %v315, 0.0
        %v348 = vadd.f32 %v346, %v347
        %v349 = vsel %vm320, %v316, 0.0
        %v350 = vadd.f32 %v348, %v349
        %v351 = vsel %vm320, %v317, 0.0
        %v352 = vadd.f32 %v350, %v351
        %v353 = vsel %vm320, %v318, 0.0
        %v354 = vadd.f32 %v352, %v353
        %v355 = vsel %vm320, %v319, 0.0
        %v356 = vadd.f32 %v354, %v355
        %v357 = vrot.slane %v356, 4
        %v358 = vadd.f32 %v356, %v357
        %v359 = vrot.slane %v358, 2
        %v360 = vadd.f32 %v358, %v359
        %v361 = vrot.slane %v360, 1
        %v362 = vadd.f32 %v360, %v361
        %v363 = vmax.f32 %v341, 0.0
        %v364 = vmax.f32 %v362, 0.0
        %v365 = vmul.f32 %v363, %v296
        %v366 = vmul.f32 %v363, %v297
        %v367 = vmul.f32 %v363, %v298
        %v368 = vmul.f32 %v363, %v299
        %v369 = vmul.f32 %v363, %v300
        %v370 = vmul.f32 %v363, %v301
        %v371 = vmul.f32 %v363, %v302
        %v372 = vmul.f32 %v363, %v303
        %v373 = vmul.f32 %v364, %v296
        %v374 = vmul.f32 %v364, %v297
        %v375 = vmul.f32 %v364, %v298
        %v376 = vmul.f32 %v364, %v299
        %v377 = vmul.f32 %v364, %v300
        %v378 = vmul.f32 %v364, %v301
        %v379 = vmul.f32 %v364, %v302
        %v380 = vmul.f32 %v364, %v303
        %v381 = vsel %vm320, %v365, 0.0
        %382 = vadd.xlane.f32.xlu0 %v381
        %v383 = vpop.xlane.xlu0 %382
        %v384 = vsel %vm320, %v366, 0.0
        %385 = vadd.xlane.f32.xlu0 %v384
        %v386 = vpop.xlane.xlu0 %385
        %v387 = vsel %vm320, %v367, 0.0
        %388 = vadd.xlane.f32.xlu0 %v387
        %v389 = vpop.xlane.xlu0 %388
        %v390 = vsel %vm320, %v368, 0.0
        %391 = vadd.xlane.f32.xlu0 %v390
        %v392 = vpop.xlane.xlu0 %391
        %v393 = vsel %vm320, %v369, 0.0
        %394 = vadd.xlane.f32.xlu0 %v393
        %v395 = vpop.xlane.xlu0 %394
        %v396 = vsel %vm320, %v370, 0.0
        %397 = vadd.xlane.f32.xlu0 %v396
        %v398 = vpop.xlane.xlu0 %397
        %v399 = vsel %vm320, %v371, 0.0
        %400 = vadd.xlane.f32.xlu0 %v399
        %v401 = vpop.xlane.xlu0 %400
        %v402 = vsel %vm320, %v372, 0.0
        %403 = vadd.xlane.f32.xlu0 %v402
        %v404 = vpop.xlane.xlu0 %403
        %v405 = vsel %vm320, %v373, 0.0
        %406 = vadd.xlane.f32.xlu0 %v405
        %v407 = vpop.xlane.xlu0 %406
        %v408 = vsel %vm320, %v374, 0.0
        %409 = vadd.xlane.f32.xlu0 %v408
        %v410 = vpop.xlane.xlu0 %409
        %v411 = vsel %vm320, %v375, 0.0
        %412 = vadd.xlane.f32.xlu0 %v411
        %v413 = vpop.xlane.xlu0 %412
        %v414 = vsel %vm320, %v376, 0.0
        %415 = vadd.xlane.f32.xlu0 %v414
        %v416 = vpop.xlane.xlu0 %415
        %v417 = vsel %vm320, %v377, 0.0
        %418 = vadd.xlane.f32.xlu0 %v417
        %v419 = vpop.xlane.xlu0 %418
        %v420 = vsel %vm320, %v378, 0.0
        %421 = vadd.xlane.f32.xlu0 %v420
        %v422 = vpop.xlane.xlu0 %421
        %v423 = vsel %vm320, %v379, 0.0
        %424 = vadd.xlane.f32.xlu0 %v423
        %v425 = vpop.xlane.xlu0 %424
        %v426 = vsel %vm320, %v380, 0.0
        %427 = vadd.xlane.f32.xlu0 %v426
        %v428 = vpop.xlane.xlu0 %427
        %v429 = vxor.u32 %v383, 2147483648
        %v430 = vxor.u32 %v386, 2147483648
        %v431 = vxor.u32 %v389, 2147483648
        %v432 = vxor.u32 %v392, 2147483648
        %v433 = vxor.u32 %v395, 2147483648
        %v434 = vxor.u32 %v398, 2147483648
        %v435 = vxor.u32 %v401, 2147483648
        %v436 = vxor.u32 %v404, 2147483648
        %v437 = vxor.u32 %v407, 2147483648
        %v438 = vxor.u32 %v410, 2147483648
        %v439 = vxor.u32 %v413, 2147483648
        %v440 = vxor.u32 %v416, 2147483648
        %v441 = vxor.u32 %v419, 2147483648
        %v442 = vxor.u32 %v422, 2147483648
        %v443 = vxor.u32 %v425, 2147483648
        %v444 = vxor.u32 %v428, 2147483648
        %v445 = vmul.f32 %v429, 1.442695
        %v446 = vpow.pop %v445
        %v447 = vmul.f32 %v430, 1.442695
        %v448 = vpow.pop %v447
        %v449 = vmul.f32 %v431, 1.442695
        %v450 = vpow.pop %v449
        %v451 = vmul.f32 %v432, 1.442695
        %v452 = vpow.pop %v451
        %v453 = vmul.f32 %v433, 1.442695
        %v454 = vpow.pop %v453
        %v455 = vmul.f32 %v434, 1.442695
        %v456 = vpow.pop %v455
        %v457 = vmul.f32 %v435, 1.442695
        %v458 = vpow.pop %v457
        %v459 = vmul.f32 %v436, 1.442695
        %v460 = vpow.pop %v459
        %v461 = vmul.f32 %v437, 1.442695
        %v462 = vpow.pop %v461
        %v463 = vmul.f32 %v438, 1.442695
        %v464 = vpow.pop %v463
        %v465 = vmul.f32 %v439, 1.442695
        %v466 = vpow.pop %v465
        %v467 = vmul.f32 %v440, 1.442695
        %v468 = vpow.pop %v467
        %v469 = vmul.f32 %v441, 1.442695
        %v470 = vpow.pop %v469
        %v471 = vmul.f32 %v442, 1.442695
        %v472 = vpow.pop %v471
        %v473 = vmul.f32 %v443, 1.442695
        %v474 = vpow.pop %v473
        %v475 = vmul.f32 %v444, 1.442695
        %v476 = vpow.pop %v475
        %v477 = vadd.f32 %v446, 1.0
        %v478 = vadd.f32 %v448, 1.0
        %v479 = vadd.f32 %v450, 1.0
        %v480 = vadd.f32 %v452, 1.0
        %v481 = vadd.f32 %v454, 1.0
        %v482 = vadd.f32 %v456, 1.0
        %v483 = vadd.f32 %v458, 1.0
        %v484 = vadd.f32 %v460, 1.0
        %v485 = vadd.f32 %v462, 1.0
        %v486 = vadd.f32 %v464, 1.0
        %v487 = vadd.f32 %v466, 1.0
        %v488 = vadd.f32 %v468, 1.0
        %v489 = vadd.f32 %v470, 1.0
        %v490 = vadd.f32 %v472, 1.0
        %v491 = vadd.f32 %v474, 1.0
        %v492 = vadd.f32 %v476, 1.0
        %v493 = vrcp.pop %v477
        %v494 = vmul.f32 1.0, %v493
        %v495 = vrcp.pop %v478
        %v496 = vmul.f32 1.0, %v495
        %v497 = vrcp.pop %v479
        %v498 = vmul.f32 1.0, %v497
        %v499 = vrcp.pop %v480
        %v500 = vmul.f32 1.0, %v499
        %v501 = vrcp.pop %v481
        %v502 = vmul.f32 1.0, %v501
        %v503 = vrcp.pop %v482
        %v504 = vmul.f32 1.0, %v503
        %v505 = vrcp.pop %v483
        %v506 = vmul.f32 1.0, %v505
        %v507 = vrcp.pop %v484
        %v508 = vmul.f32 1.0, %v507
        %v509 = vrcp.pop %v485
        %v510 = vmul.f32 1.0, %v509
        %v511 = vrcp.pop %v486
        %v512 = vmul.f32 1.0, %v511
        %v513 = vrcp.pop %v487
        %v514 = vmul.f32 1.0, %v513
        %v515 = vrcp.pop %v488
        %v516 = vmul.f32 1.0, %v515
        %v517 = vrcp.pop %v489
        %v518 = vmul.f32 1.0, %v517
        %v519 = vrcp.pop %v490
        %v520 = vmul.f32 1.0, %v519
        %v521 = vrcp.pop %v491
        %v522 = vmul.f32 1.0, %v521
        %v523 = vrcp.pop %v492
        %v524 = vmul.f32 1.0, %v523
        %v525 = vmul.f32 %v192, %v494
        %v526 = vmul.f32 %v193, %v494
        %v527 = vmul.f32 %v194, %v496
        %v528 = vmul.f32 %v195, %v496
        %v529 = vmul.f32 %v196, %v498
        %v530 = vmul.f32 %v197, %v498
        %v531 = vmul.f32 %v198, %v500
        %v532 = vmul.f32 %v199, %v500
        %v533 = vmul.f32 %v200, %v502
        %v534 = vmul.f32 %v201, %v502
        %v535 = vmul.f32 %v202, %v504
        %v536 = vmul.f32 %v203, %v504
        %v537 = vmul.f32 %v204, %v506
        %v538 = vmul.f32 %v205, %v506
        %v539 = vmul.f32 %v206, %v508
        %v540 = vmul.f32 %v207, %v508
        %v541 = vmul.f32 %v208, %v510
        %v542 = vmul.f32 %v209, %v510
        %v543 = vmul.f32 %v210, %v512
        %v544 = vmul.f32 %v211, %v512
        %v545 = vmul.f32 %v212, %v514
        %v546 = vmul.f32 %v213, %v514
        %v547 = vmul.f32 %v214, %v516
        %v548 = vmul.f32 %v215, %v516
        %v549 = vmul.f32 %v216, %v518
        %v550 = vmul.f32 %v217, %v518
        %v551 = vmul.f32 %v218, %v520
        %v552 = vmul.f32 %v219, %v520
        %v553 = vmul.f32 %v220, %v522
        %v554 = vmul.f32 %v221, %v522
        %v555 = vmul.f32 %v222, %v524
        %v556 = vmul.f32 %v223, %v524
        %557 = vst [vmem:[%s189] sm:$0xff] %v525
        %558 = vst [vmem:[%s189 + $0x8] sm:$0xff] %v526
        %559 = vst [vmem:[%s189 + $0x10] sm:$0xff] %v527
        %560 = vst [vmem:[%s189 + $0x18] sm:$0xff] %v528
        %561 = vst [vmem:[%s189 + $0x20] sm:$0xff] %v529
        %562 = vst [vmem:[%s189 + $0x28] sm:$0xff] %v530
        %563 = vst [vmem:[%s189 + $0x30] sm:$0xff] %v531
        %564 = vst [vmem:[%s189 + $0x38] sm:$0xff] %v532
        %565 = vst [vmem:[%s189 + $0x40] sm:$0xff] %v533
        %566 = vst [vmem:[%s189 + $0x48] sm:$0xff] %v534
        %567 = vst [vmem:[%s189 + $0x50] sm:$0xff] %v535
        %568 = vst [vmem:[%s189 + $0x58] sm:$0xff] %v536
        %569 = vst [vmem:[%s189 + $0x60] sm:$0xff] %v537
        %570 = vst [vmem:[%s189 + $0x68] sm:$0xff] %v538
        %571 = vst [vmem:[%s189 + $0x70] sm:$0xff] %v539
        %572 = vst [vmem:[%s189 + $0x78] sm:$0xff] %v540
        %573 = vst [vmem:[%s189 + $0x80] sm:$0xff] %v541
        %574 = vst [vmem:[%s189 + $0x88] sm:$0xff] %v542
        %575 = vst [vmem:[%s189 + $0x90] sm:$0xff] %v543
        %576 = vst [vmem:[%s189 + $0x98] sm:$0xff] %v544
        %577 = vst [vmem:[%s189 + $0xa0] sm:$0xff] %v545
        %578 = vst [vmem:[%s189 + $0xa8] sm:$0xff] %v546
        %579 = vst [vmem:[%s189 + $0xb0] sm:$0xff] %v547
        %580 = vst [vmem:[%s189 + $0xb8] sm:$0xff] %v548
        %581 = vst [vmem:[%s189 + $0xc0] sm:$0xff] %v549
        %582 = vst [vmem:[%s189 + $0xc8] sm:$0xff] %v550
        %583 = vst [vmem:[%s189 + $0xd0] sm:$0xff] %v551
        %584 = vst [vmem:[%s189 + $0xd8] sm:$0xff] %v552
        %585 = vst [vmem:[%s189 + $0xe0] sm:$0xff] %v553
        %586 = vst [vmem:[%s189 + $0xe8] sm:$0xff] %v554
        %587 = vst [vmem:[%s189 + $0xf0] sm:$0xff] %v555
        %588 = vst [vmem:[%s189 + $0xf8] sm:$0xff] %v556
        %s589 = sand.u32 %s96, 1
        %s590 = scalar_lea.sflag [#allocation4], %s589
        %s591 = sand.u32 %s96, 1
        %s592 = smul.addr %s591, 256
        %s593 = scalar_lea.vmem [#allocation5], %s592
        // Predicated region
        $region37: #{tpu_custom_call.1} parent=31 // pred_check
          %p594 = pneg %p106
        $region38: #{tpu_custom_call.1} parent=31 // pred_check_branch
          %596 = sbr.rel (%p594) target = $region40
        $region39: #{tpu_custom_call.1} parent=31 // pred_region
          %s597 = smul.u32 2, %s20
          %s599 = ssub.s32 4096, 4096
          %600 = vsyncadd %s590, %s599
          %s601 = smul.addr %s597, 16
          %s602 = smul.addr %s601, 128
          %s603 = scalar_lea.hbm %s3, %s602
          %s604 = sshll.u32 %s593, 4
          %s605 = int_to_ptr.vmem [resolvable:$true] %s604
          %610 = dma.vmem_to_hbm [thread:$0]  %s605, 4096, %s603, %s590, 256, 256, 16
        $region40: #{tpu_custom_call.1} parent=31 // pred_fallthru
          _
      $region32: #{tpu_custom_call.1} parent=5 // pred_fallthru
        _
      %p611 = scmp.le.s32.totalorder 2, %s15
      // Predicated region
      $region41: #{tpu_custom_call.1} parent=5 // pred_check
        %p612 = pneg %p611
      $region42: #{tpu_custom_call.1} parent=5 // pred_check_branch
        %614 = sbr.rel (%p612) target = $region44
      $region43: #{tpu_custom_call.1} parent=5 // pred_region
        %s615 = ssub.s32 %s15, 2
        // Predicated region
        $region45: #{tpu_custom_call.1} parent=43 // pred_check
          %p616 = pneg %p112
        $region46: #{tpu_custom_call.1} parent=43 // pred_check_branch
          %618 = sbr.rel (%p616) target = $region48
        $region47: #{tpu_custom_call.1} parent=43 // pred_region
          %s619 = sand.u32 %s97, 1
          %s620 = scalar_lea.sflag [#allocation4], %s619
          %s621 = sand.u32 %s97, 1
          %s622 = smul.addr %s621, 256
          %s623 = scalar_lea.vmem [#allocation5], %s622
          %624 = dma.done %s620, 4096
        $region48: #{tpu_custom_call.1} parent=43 // pred_fallthru
          _
      $region44: #{tpu_custom_call.1} parent=5 // pred_fallthru
        _
    $region6: #{tpu_custom_call.1} parent=1 // loop_footer
      %s19 = sadd.s32 1, %s15
    $region7: #{tpu_custom_call.1} parent=1 // loop_footer_branch
      %14 = sbr.rel target = $region3
    $region8: #{tpu_custom_call.1} parent=1 // loop_exit
      _
    %625 = vsyncpa [#allocation3], 1
    %s626 = scalar_lea.sflag [#allocation3], 1
    %627 = vsyncpa %s626, 1
    %628 = vsyncpa [#allocation4], 1
    %s629 = scalar_lea.sflag [#allocation4], 1
    %630 = vsyncpa %s629, 1

</llo_original>
